<compile_context>
chip_gen: v5e
topology: v5e:2x2
jax: 0.10.0
libtpu: 0.0.40
codegen_flags: <defaults>
</compile_context>

<pallas_src>
import functools

import jax
import jax.numpy as jnp
import numpy as np
from jax.experimental import pallas as pl
from jax.experimental.pallas import tpu as pltpu

GROUP_SIZE = 256                    # default_compression_config.group_size
NUM_BITS = 8                        # default_compression_config.num_bits
QMAX = 2 ** (NUM_BITS - 1) - 1      # 127 (symmetric)
MAX_FUSED_GROUPS = 8                # up to tk = 8*256 = 2048 contracted per step


def _round_up(x, m):
    return ((x + m - 1) // m) * m


def _choose_group_fuse(num_groups, max_gs=MAX_FUSED_GROUPS):
    """Pick how many 256-wide K groups to fuse per grid step + padded group count.

    Minimizes  steps * (per-step pipeline overhead + per-group MXU time), i.e.
    trades a little zero-padded weight against gs=1 overhead domination.
    """
    best_gs, best_cost = 1, None
    for gs in range(1, min(max_gs, num_groups) + 1):
        steps = -(-num_groups // gs)
        cost = steps * (0.35 + 0.15 * gs)   # us: ~0.35 overhead, ~0.15 MXU/group
        if best_cost is None or cost < best_cost:
            best_gs, best_cost = gs, cost
    return best_gs, -(-num_groups // best_gs) * best_gs


def _vmem_capacity_bytes():
    """Physical per-core VMEM (64 MiB v7x, 128 MiB v5e/v6e); safe fallback."""
    try:
        cap = getattr(pltpu.get_tpu_info(), "vmem_capacity_bytes", None)
        if cap:
            return int(cap)
    except Exception:
        pass
    return 64 * 1024 * 1024


# ---------------------------------------------------------------------------
# Group-wise symmetric int8 "compression" (init-time glue, plain JAX)
# ---------------------------------------------------------------------------
def compress_weight(w):
    """w: (N, K) f32 -> (q (G, 256, N) int8, inv_scale (G, 1, N) f32, original K)."""
    n, k = w.shape
    num_groups = pl.cdiv(k, GROUP_SIZE)
    pad = num_groups * GROUP_SIZE - k
    if pad:
        w = jnp.pad(w, ((0, 0), (0, pad)))
    data = w.reshape(n, num_groups, GROUP_SIZE)
    amax = jnp.max(jnp.abs(data), axis=2, keepdims=True)            # (N, G, 1)
    scale = jnp.where(amax > 0, QMAX / amax, 1.0)                   # zero-group guard
    q = jnp.round(jnp.clip(data * scale, -QMAX, QMAX)).astype(jnp.int8)
    inv_scale = jnp.where(amax > 0, amax / QMAX, 1.0)               # (N, G, 1)

    # (K, N)-major kernel layouts: weight (G, 256, N) so the MXU contraction is
    # (tm,tk)@(tk,tn) with no RHS transpose; scales lane-dense (G, 1, N).
    q = jnp.transpose(q, (1, 2, 0))
    inv_scale = jnp.transpose(inv_scale, (1, 2, 0)).astype(jnp.float32)

    # Pad the group count so several groups can always be fused per grid step
    # (zero-weight groups contribute exactly 0; scale 1.0 keeps them finite).
    _, padded_groups = _choose_group_fuse(num_groups)
    if padded_groups != num_groups:
        gpad = padded_groups - num_groups
        q = jnp.pad(q, ((0, gpad), (0, 0), (0, 0)))
        inv_scale = jnp.pad(inv_scale, ((0, gpad), (0, 0), (0, 0)),
                            constant_values=1.0)
    return q, inv_scale, k


# ---------------------------------------------------------------------------
# Pallas kernel
# ---------------------------------------------------------------------------
def _clinear_kernel(x_ref, wq_ref, iscale_ref, b_ref, o_ref, *scratch,
                    fuse_dequant):
    acc_ref = scratch[0] if scratch else o_ref       # resident f32 accumulator
    kk = pl.program_id(2)

    @pl.when(kk == 0)
    def _init():   # bias-initialize instead of zeros + finalize add
        acc_ref[...] = jnp.broadcast_to(b_ref[...], acc_ref.shape).astype(acc_ref.dtype)

    gs, gsz, tn = wq_ref.shape
    if fuse_dequant:
        # Large-M / compute-bound: dequantize the int8 tile (per-group scale is
        # lane-aligned) and issue ONE long-K MXU dot accumulated in place.
        w = wq_ref[...].astype(jnp.float32) * iscale_ref[...]        # (gs, 256, tn)
        w = w.reshape(gs * gsz, tn).astype(jnp.bfloat16)
        acc_ref[...] += jnp.dot(x_ref[...], w,
                                preferred_element_type=jnp.float32)
    else:
        # Small-M / weight-HBM-bound: exact post-matmul per-group scaling
        # (scale cost ~ gs*tm*tn is negligible at small tm).
        for g in range(gs):                                          # static unroll
            p = jnp.dot(x_ref[:, pl.ds(g * gsz, gsz)],
                        wq_ref[g].astype(jnp.bfloat16),
                        preferred_element_type=jnp.float32)          # (tm, tn)
            acc_ref[...] += p * iscale_ref[g]

    if scratch:                     # non-f32 output: cast on the last K step
        @pl.when(kk == pl.num_programs(2) - 1)
        def _flush():
            o_ref[...] = acc_ref[...].astype(o_ref.dtype)


# ---------------------------------------------------------------------------
# Wrapper
# ---------------------------------------------------------------------------
@functools.partial(jax.jit, static_argnames=("orig_k", "out_dtype"))
def clinear_forward(x, wq, inv_scale, bias, orig_k, out_dtype=jnp.float32):
    """x: (..., K); wq: (G, 256, N) int8; inv_scale: (G, 1, N) f32; bias: (N,)."""
    num_groups, group_size, n = wq.shape
    k_pad = num_groups * group_size
    assert x.shape[-1] == orig_k

    lead_shape = x.shape[:-1]
    m = 1
    for d in lead_shape:
        m *= d
    # Straight to bf16 (MXU operand) — no f32 intermediate pass over activations.
    x2 = x.reshape(m, x.shape[-1]).astype(jnp.bfloat16)
    if x2.shape[1] != k_pad:                 # zero-padded K columns contribute 0
        x2 = jnp.pad(x2, ((0, 0), (0, k_pad - x2.shape[1])))

    # ---- K: fuse as many 256-wide groups per step as the padded count allows.
    gs = max(d for d in range(1, MAX_FUSED_GROUPS + 1) if num_groups % d == 0)
    tk = gs * group_size

    # ---- M tile: adaptive (minimize padding waste), capped at 512.
    if m <= 512:
        tm = _round_up(m, 16)
    else:
        tm = min((512, 384, 256, 128), key=lambda c: ((-m) % c, -c))

    # ---- N tile: <=512, lane-dense; if M has a single block keep >=2 blocks
    # on N so both v7x TensorCores get work.
    tn_cands = [t for t in (512, 384, 256, 128) if n % t == 0]
    if not tn_cands:
        tn = n                               # full-extent fallback (small / odd N)
    elif pl.cdiv(m, tm) == 1:
        split = [t for t in tn_cands if n // t >= 2]
        tn = split[0] if split else tn_cands[0]
    else:
        tn = tn_cands[0]

    use_scratch = np.dtype(out_dtype) != np.dtype(jnp.float32)

    # ---- generation-aware VMEM budget (64 MiB v7x vs 128 MiB v5e/v6e).
    vmem_cap = _vmem_capacity_bytes()
    budget = int(vmem_cap * 0.6)

    def footprint(tm_, tn_):
        per_step = (tm_ * tk * 2            # x tile (bf16)
                    + tk * tn_              # int8 weight tile
                    + gs * tn_ * 4 + tn_ * 4
                    + tm_ * tn_ * 4)        # output tile
        return 2 * per_step + (tm_ * tn_ * 4 if use_scratch else 0)

    while footprint(tm, tn) > budget and tm > 128:   # rarely binds (<~12 MiB max)
        tm = max(128, _round_up(tm // 2, 16))

    m_pad = _round_up(m, tm)
    if m_pad != m:
        x2 = jnp.pad(x2, ((0, m_pad - m), (0, 0)))

    bias2 = bias.reshape(1, n).astype(jnp.float32)

    fuse_dequant = tm >= 256        # in-weight dequant amortizes over many rows
    grid = (m_pad // tm, n // tn, num_groups // gs)

    # Decode/GEMV regime: deeper-buffered weight streaming keeps HBM busy.
    wq_spec_kwargs = {}
    if m_pad <= 128 and grid[2] >= 3:
        wq_spec_kwargs["pipeline_mode"] = pl.Buffered(3)

    scratch_shapes = [pltpu.VMEM((tm, tn), jnp.float32)] if use_scratch else []

    out = pl.pallas_call(
        functools.partial(_clinear_kernel, fuse_dequant=fuse_dequant),
        out_shape=jax.ShapeDtypeStruct((m_pad, n), out_dtype),
        grid_spec=pltpu.PrefetchScalarGridSpec(
            num_scalar_prefetch=0,
            grid=grid,
            in_specs=[
                pl.BlockSpec((tm, tk), lambda i, j, kk: (i, kk)),        # x (bf16)
                pl.BlockSpec((gs, group_size, tn),
                             lambda i, j, kk: (kk, 0, j),
                             **wq_spec_kwargs),                           # int8 weight
                pl.BlockSpec((gs, 1, tn), lambda i, j, kk: (kk, 0, j)),   # inv_scale
                pl.BlockSpec((1, tn), lambda i, j, kk: (0, j)),           # bias
            ],
            out_specs=pl.BlockSpec((tm, tn), lambda i, j, kk: (i, j)),
            scratch_shapes=scratch_shapes,
        ),
        compiler_params=pltpu.CompilerParams(
            dimension_semantics=("parallel", "parallel", "arbitrary"),
            vmem_limit_bytes=min(int(vmem_cap * 3 // 4), 100 * 1024 * 1024),
        ),
    )(x2, wq, inv_scale, bias2)

    out = out[:m]
    return out.reshape(lead_shape + (n,))


# ---------------------------------------------------------------------------
def reference_forward(x, wq, inv_scale, bias, orig_k):
    """Pure-JAX f32 reference of decompress + F.linear."""
    w_deq = wq.astype(jnp.float32) * inv_scale          # (G, 256, N)
    w = w_deq.reshape(-1, wq.shape[2])[:orig_k]         # (K, N)
    return jnp.einsum("...k,kn->...n", x, w) + bias


if __name__ == "__main__":
    key = jax.random.PRNGKey(0)
    kx, kw, kb, kx2, kw2, kb2 = jax.random.split(key, 6)

    # Case 1: small / decode-like M (post-matmul-scale path), f32 output.
    B, S, K, N = 2, 8, 512, 128
    x = jax.random.normal(kx, (B, S, K), dtype=jnp.float32)
    weight = jax.random.normal(kw, (N, K), dtype=jnp.float32) * 0.05
    bias = jax.random.normal(kb, (N,), dtype=jnp.float32) * 0.1
    wq, inv_scale, orig_k = compress_weight(weight)
    out = jax.block_until_ready(clinear_forward(x, wq, inv_scale, bias, orig_k))
    ref = reference_forward(x, wq, inv_scale, bias, orig_k)
    assert out.shape == (B, S, N)
    assert jnp.allclose(out, ref, rtol=3e-2, atol=3e-2), "mismatch (case 1)"

    # Case 2: larger M (fused in-kernel dequant, multi-block N), bf16 output.
    B2, S2, K2, N2 = 2, 256, 768, 256
    x_b = jax.random.normal(kx2, (B2, S2, K2), dtype=jnp.float32)
    w_b = jax.random.normal(kw2, (N2, K2), dtype=jnp.float32) * 0.05
    b_b = jax.random.normal(kb2, (N2,), dtype=jnp.float32) * 0.1
    wq2, inv_scale2, orig_k2 = compress_weight(w_b)
    out2 = jax.block_until_ready(
        clinear_forward(x_b, wq2, inv_scale2, b_b, orig_k2,
                        out_dtype=jnp.bfloat16))
    ref2 = reference_forward(x_b, wq2, inv_scale2, b_b, orig_k2)
    assert out2.shape == (B2, S2, N2)
    assert jnp.allclose(out2.astype(jnp.float32), ref2,
                        rtol=5e-2, atol=5e-2), "mismatch (case 2)"

    print("KERNEL_OK")
</pallas_src>

<mosaic_0001>
module attributes {stable_mosaic.version = 11 : i64} {
  func.func @_clinear_kernel(%arg0: i32, %arg1: i32, %arg2: i32, %arg3: memref<16x512xbf16, #tpu.memory_space<vmem>>, %arg4: memref<2x256x128xi8, #tpu.memory_space<vmem>>, %arg5: memref<2x1x128xf32, #tpu.memory_space<vmem>>, %arg6: memref<1x128xf32, #tpu.memory_space<vmem>>, %arg7: memref<16x128xf32, #tpu.memory_space<vmem>>) attributes {dimension_semantics = [#tpu.dimension_semantics<parallel>, #tpu.dimension_semantics<parallel>, #tpu.dimension_semantics<arbitrary>], iteration_bounds = array<i64: 1, 1, 1>, scalar_prefetch = 0 : i64, scratch_operands = 0 : i64, tpu.core_type = #tpu.core_type<tc>, window_params = [{transform_indices = @transform_0, window_bounds = array<i64: 16, 512>}, {transform_indices = @transform_1, window_bounds = array<i64: 2, 256, 128>}, {transform_indices = @transform_2, window_bounds = array<i64: 2, 1, 128>}, {transform_indices = @transform_3, window_bounds = array<i64: 1, 128>}, {transform_indices = @transform_4, window_bounds = array<i64: 16, 128>}]} {
    %c0_i32 = arith.constant 0 : i32
    %0 = arith.cmpi eq, %arg2, %c0_i32 : i32
    %1 = arith.extui %0 : i1 to i32
    %c0_i32_0 = arith.constant 0 : i32
    %2 = arith.cmpi ne, %1, %c0_i32_0 : i32
    scf.if %2 {
      %c0_23 = arith.constant 0 : index
      %c0_24 = arith.constant 0 : index
      %27 = vector.load %arg6[%c0_23, %c0_24] : memref<1x128xf32, #tpu.memory_space<vmem>>, vector<1x128xf32>
      %28 = vector.shape_cast %27 : vector<1x128xf32> to vector<1x128xf32>
      %29 = vector.broadcast %28 : vector<1x128xf32> to vector<16x128xf32>
      %c0_25 = arith.constant 0 : index
      %c0_26 = arith.constant 0 : index
      %30 = vector.load %arg7[%c0_25, %c0_26] : memref<16x128xf32, #tpu.memory_space<vmem>>, vector<16x128xf32>
      tpu.vector_store %arg7[%c0_25, %c0_26], %29 {strides = array<i32>} : memref<16x128xf32, #tpu.memory_space<vmem>>, vector<16x128xf32>,
    } else {
    }
    %c0 = arith.constant 0 : index
    %c0_1 = arith.constant 0 : index
    %3 = vector.load %arg3[%c0, %c0_1] : memref<16x512xbf16, #tpu.memory_space<vmem>>, vector<16x256xbf16>
    %c0_2 = arith.constant 0 : index
    %c0_3 = arith.constant 0 : index
    %c0_4 = arith.constant 0 : index
    %4 = vector.load %arg4[%c0_2, %c0_3, %c0_4] : memref<2x256x128xi8, #tpu.memory_space<vmem>>, vector<1x256x128xi8>
    %5 = vector.shape_cast %4 : vector<1x256x128xi8> to vector<256x128xi8>
    %6 = arith.sitofp %5 : vector<256x128xi8> to vector<256x128xbf16>
    %cst = arith.constant dense<0.000000e+00> : vector<16x128xf32>
    %7 = tpu.matmul %3, %6, %cst {dimension_numbers = #tpu.dot_dimension_numbers<[1], [0], [0], [1], [0, 0, 1, 1], [], []>} : vector<16x256xbf16>, vector<256x128xbf16>, vector<16x128xf32> -> vector<16x128xf32>
    %c0_5 = arith.constant 0 : index
    %c0_6 = arith.constant 0 : index
    %8 = vector.load %arg7[%c0_5, %c0_6] : memref<16x128xf32, #tpu.memory_space<vmem>>, vector<16x128xf32>
    %c0_7 = arith.constant 0 : index
    %c0_8 = arith.constant 0 : index
    %c0_9 = arith.constant 0 : index
    %9 = vector.load %arg5[%c0_7, %c0_8, %c0_9] : memref<2x1x128xf32, #tpu.memory_space<vmem>>, vector<1x1x128xf32>
    %10 = vector.shape_cast %9 : vector<1x1x128xf32> to vector<1x128xf32>
    %11 = vector.broadcast %10 : vector<1x128xf32> to vector<16x128xf32>
    %12 = arith.mulf %7, %11 : vector<16x128xf32>
    %13 = arith.addf %8, %12 : vector<16x128xf32>
    %c0_10 = arith.constant 0 : index
    %c0_11 = arith.constant 0 : index
    %14 = vector.load %arg7[%c0_10, %c0_11] : memref<16x128xf32, #tpu.memory_space<vmem>>, vector<16x128xf32>
    tpu.vector_store %arg7[%c0_10, %c0_11], %13 {strides = array<i32>} : memref<16x128xf32, #tpu.memory_space<vmem>>, vector<16x128xf32>,
    %c0_12 = arith.constant 0 : index
    %c256 = arith.constant 256 : index
    %15 = vector.load %arg3[%c0_12, %c256] : memref<16x512xbf16, #tpu.memory_space<vmem>>, vector<16x256xbf16>
    %c1 = arith.constant 1 : index
    %c0_13 = arith.constant 0 : index
    %c0_14 = arith.constant 0 : index
    %16 = vector.load %arg4[%c1, %c0_13, %c0_14] : memref<2x256x128xi8, #tpu.memory_space<vmem>>, vector<1x256x128xi8>
    %17 = vector.shape_cast %16 : vector<1x256x128xi8> to vector<256x128xi8>
    %18 = arith.sitofp %17 : vector<256x128xi8> to vector<256x128xbf16>
    %cst_15 = arith.constant dense<0.000000e+00> : vector<16x128xf32>
    %19 = tpu.matmul %15, %18, %cst_15 {dimension_numbers = #tpu.dot_dimension_numbers<[1], [0], [0], [1], [0, 0, 1, 1], [], []>} : vector<16x256xbf16>, vector<256x128xbf16>, vector<16x128xf32> -> vector<16x128xf32>
    %c0_16 = arith.constant 0 : index
    %c0_17 = arith.constant 0 : index
    %20 = vector.load %arg7[%c0_16, %c0_17] : memref<16x128xf32, #tpu.memory_space<vmem>>, vector<16x128xf32>
    %c1_18 = arith.constant 1 : index
    %c0_19 = arith.constant 0 : index
    %c0_20 = arith.constant 0 : index
    %21 = vector.load %arg5[%c1_18, %c0_19, %c0_20] : memref<2x1x128xf32, #tpu.memory_space<vmem>>, vector<1x1x128xf32>
    %22 = vector.shape_cast %21 : vector<1x1x128xf32> to vector<1x128xf32>
    %23 = vector.broadcast %22 : vector<1x128xf32> to vector<16x128xf32>
    %24 = arith.mulf %19, %23 : vector<16x128xf32>
    %25 = arith.addf %20, %24 : vector<16x128xf32>
    %c0_21 = arith.constant 0 : index
    %c0_22 = arith.constant 0 : index
    %26 = vector.load %arg7[%c0_21, %c0_22] : memref<16x128xf32, #tpu.memory_space<vmem>>, vector<16x128xf32>
    tpu.vector_store %arg7[%c0_21, %c0_22], %25 {strides = array<i32>} : memref<16x128xf32, #tpu.memory_space<vmem>>, vector<16x128xf32>,
    return
  }
  func.func @transform_0(%arg0: i32, %arg1: i32, %arg2: i32) -> (i32, i32) {
    %c0_i32 = arith.constant 0 : i32
    return %arg0, %arg2 : i32, i32
  }
  func.func @transform_1(%arg0: i32, %arg1: i32, %arg2: i32) -> (i32, i32, i32) {
    %c0_i32 = arith.constant 0 : i32
    %c0_i32_0 = arith.constant 0 : i32
    return %arg2, %c0_i32, %arg1 : i32, i32, i32
  }
  func.func @transform_2(%arg0: i32, %arg1: i32, %arg2: i32) -> (i32, i32, i32) {
    %c0_i32 = arith.constant 0 : i32
    %c0_i32_0 = arith.constant 0 : i32
    return %arg2, %c0_i32, %arg1 : i32, i32, i32
  }
  func.func @transform_3(%arg0: i32, %arg1: i32, %arg2: i32) -> (i32, i32) {
    %c0_i32 = arith.constant 0 : i32
    %c0_i32_0 = arith.constant 0 : i32
    return %c0_i32, %arg1 : i32, i32
  }
  func.func @transform_4(%arg0: i32, %arg1: i32, %arg2: i32) -> (i32, i32) {
    %c0_i32 = arith.constant 0 : i32
    return %arg0, %arg1 : i32, i32
  }
}

</mosaic_0001>

<llo_original>
// kernel: clinear_forward.1
$region0: #{clinear_forward.1}
  #allocation0 [shape = 'u32[]', space=smem, size = 0x4, offset = 0x4, fixed_abs, tag = 'smem constant byte address 0x4 - core index']
  #allocation1 [shape = 'u32[72,128]{1,0:T(1,128)}', space=vmem, size = 0x9000, scoped, tag = 'internal scratch']
  %s0 = inlined_call_operand.vmem [shape: bf16[16,512], index: 0, kind: input, shape index: {}]
  %s1 = inlined_call_operand.hbm [shape: s8[2,256,128], index: 1, kind: input, shape index: {}]
  %s2 = inlined_call_operand.vmem [shape: f32[2,1,128], index: 2, kind: input, shape index: {}]
  %s3 = inlined_call_operand.vmem [shape: f32[1,128], index: 3, kind: input, shape index: {}]
  %s4 = inlined_call_operand.hbm [shape: f32[16,128], index: 4, kind: output, shape index: {}]
  %s5 = sld [smem:[#allocation0]]
  $region34: #{clinear_forward.1} parent=0
    _
  %s7 = ssub.s32 1, %s5
  %s8 = scalar_select 0, %s7, %s5
  $region1: #{clinear_forward.1} parent=0
    #allocation2 [shape = 'u8[65536]{0}', space=vmem, size = 0x10000, scoped, tag = 'input window, operand 1, single buffered']
    #allocation3 [shape = 's32[1]{0}', space=sflag, size = 0x4, scoped, tag = 'scoped memory for clinear_forward.1']
    #allocation4 [shape = 's32[1]{0}', space=sflag, size = 0x4, scoped, tag = 'scoped memory for clinear_forward.1']
    #allocation5 [shape = 'u8[8192]{0}', space=vmem, size = 0x2000, scoped, tag = 'output window, operand 0, single buffered']
    %9 = vsyncpa [#allocation3], 0
    %10 = vsyncpa [#allocation4], 0
    // Predicated region
    $region2: #{clinear_forward.1} parent=1 // pred_check
      _
    $region3: #{clinear_forward.1} parent=1 // pred_check_branch
      %12 = sbr.rel (0) target = $region5
    $region4: #{clinear_forward.1} parent=1 // pred_region
      _
    $region5: #{clinear_forward.1} parent=1 // pred_fallthru
      _
    // Predicated region
    $region6: #{clinear_forward.1} parent=1 // pred_check
      _
    $region7: #{clinear_forward.1} parent=1 // pred_check_branch
      %14 = sbr.rel (0) target = $region9
    $region8: #{clinear_forward.1} parent=1 // pred_region
      %16 = vsyncadd [#allocation3], 0
      %s17 = sshll.u32 %s1, 4
      %s18 = int_to_ptr.hbm [resolvable:$true] %s17
      %s19 = sshll.u32 [#allocation2], 4
      %s20 = int_to_ptr.vmem [resolvable:$true] %s19
      %25 = dma.hbm_to_vmem [thread:$0]  %s18, 2048, %s20, [#allocation3], 128, 128, 8
    $region9: #{clinear_forward.1} parent=1 // pred_fallthru
      _
    // Predicated region
    $region10: #{clinear_forward.1} parent=1 // pred_check
      _
    $region11: #{clinear_forward.1} parent=1 // pred_check_branch
      %27 = sbr.rel (0) target = $region13
    $region12: #{clinear_forward.1} parent=1 // pred_region
      _
    $region13: #{clinear_forward.1} parent=1 // pred_fallthru
      _
    // Predicated region
    $region14: #{clinear_forward.1} parent=1 // pred_check
      _
    $region15: #{clinear_forward.1} parent=1 // pred_check_branch
      %29 = sbr.rel (0) target = $region17
    $region16: #{clinear_forward.1} parent=1 // pred_region
      _
    $region17: #{clinear_forward.1} parent=1 // pred_fallthru
      _
    // Predicated region
    $region18: #{clinear_forward.1} parent=1 // pred_check
      _
    $region19: #{clinear_forward.1} parent=1 // pred_check_branch
      %31 = sbr.rel (0) target = $region21
    $region20: #{clinear_forward.1} parent=1 // pred_region
      %33 = dma.done [#allocation3], 2048
    $region21: #{clinear_forward.1} parent=1 // pred_fallthru
      _
    %p34 = scmp.eq.s32.totalorder 0, 0
    // Predicated region
    $region22: #{clinear_forward.1} parent=1 // pred_check
      %p35 = pneg %p34
    $region23: #{clinear_forward.1} parent=1 // pred_check_branch
      %37 = sbr.rel (%p35) target = $region25
    $region24: #{clinear_forward.1} parent=1 // pred_region
      %v38 = vld [vmem:[%s3] sm:$0x1]
      %v40 = vperm.slane %v38, 0
      %42 = vst [vmem:[#allocation5] sm:$0xff] %v40
      %43 = vst [vmem:[#allocation5 + $0x8] sm:$0xff] %v40
    $region25: #{clinear_forward.1} parent=1 // pred_fallthru
      _
    %v44 = vld [vmem:[%s0] sm:$0xff]
    %v45 = vld [vmem:[%s0 + $0x10] sm:$0xff]
    %v46 = vld [vmem:[#allocation2] sm:$0xff]
    %v47 = vld [vmem:[#allocation2 + $0x8] sm:$0xff]
    %v48 = vld [vmem:[#allocation2 + $0x10] sm:$0xff]
    %v49 = vld [vmem:[#allocation2 + $0x18] sm:$0xff]
    %v50 = vld [vmem:[#allocation2 + $0x20] sm:$0xff]
    %v51 = vld [vmem:[#allocation2 + $0x28] sm:$0xff]
    %v52 = vld [vmem:[#allocation2 + $0x30] sm:$0xff]
    %v53 = vld [vmem:[#allocation2 + $0x38] sm:$0xff]
    %v54 = vunpack.c.0.s8 %v46
    %v55 = vunpack.c.1.s8 %v46
    %v56 = vunpack.c.2.s8 %v46
    %v57 = vunpack.c.3.s8 %v46
    %v58 = vunpack.c.0.s8 %v47
    %v59 = vunpack.c.1.s8 %v47
    %v60 = vunpack.c.2.s8 %v47
    %v61 = vunpack.c.3.s8 %v47
    %v62 = vunpack.c.0.s8 %v48
    %v63 = vunpack.c.1.s8 %v48
    %v64 = vunpack.c.2.s8 %v48
    %v65 = vunpack.c.3.s8 %v48
    %v66 = vunpack.c.0.s8 %v49
    %v67 = vunpack.c.1.s8 %v49
    %v68 = vunpack.c.2.s8 %v49
    %v69 = vunpack.c.3.s8 %v49
    %v70 = vunpack.c.0.s8 %v50
    %v71 = vunpack.c.1.s8 %v50
    %v72 = vunpack.c.2.s8 %v50
    %v73 = vunpack.c.3.s8 %v50
    %v74 = vunpack.c.0.s8 %v51
    %v75 = vunpack.c.1.s8 %v51
    %v76 = vunpack.c.2.s8 %v51
    %v77 = vunpack.c.3.s8 %v51
    %v78 = vunpack.c.0.s8 %v52
    %v79 = vunpack.c.1.s8 %v52
    %v80 = vunpack.c.2.s8 %v52
    %v81 = vunpack.c.3.s8 %v52
    %v82 = vunpack.c.0.s8 %v53
    %v83 = vunpack.c.1.s8 %v53
    %v84 = vunpack.c.2.s8 %v53
    %v85 = vunpack.c.3.s8 %v53
    %v86 = vcvt.s32.f32 %v54
    %v87 = vcvt.s32.f32 %v55
    %v88 = vcvt.s32.f32 %v56
    %v89 = vcvt.s32.f32 %v57
    %v90 = vcvt.s32.f32 %v58
    %v91 = vcvt.s32.f32 %v59
    %v92 = vcvt.s32.f32 %v60
    %v93 = vcvt.s32.f32 %v61
    %v94 = vcvt.s32.f32 %v62
    %v95 = vcvt.s32.f32 %v63
    %v96 = vcvt.s32.f32 %v64
    %v97 = vcvt.s32.f32 %v65
    %v98 = vcvt.s32.f32 %v66
    %v99 = vcvt.s32.f32 %v67
    %v100 = vcvt.s32.f32 %v68
    %v101 = vcvt.s32.f32 %v69
    %v102 = vcvt.s32.f32 %v70
    %v103 = vcvt.s32.f32 %v71
    %v104 = vcvt.s32.f32 %v72
    %v105 = vcvt.s32.f32 %v73
    %v106 = vcvt.s32.f32 %v74
    %v107 = vcvt.s32.f32 %v75
    %v108 = vcvt.s32.f32 %v76
    %v109 = vcvt.s32.f32 %v77
    %v110 = vcvt.s32.f32 %v78
    %v111 = vcvt.s32.f32 %v79
    %v112 = vcvt.s32.f32 %v80
    %v113 = vcvt.s32.f32 %v81
    %v114 = vcvt.s32.f32 %v82
    %v115 = vcvt.s32.f32 %v83
    %v116 = vcvt.s32.f32 %v84
    %v117 = vcvt.s32.f32 %v85
    %v118 = vpack.c.bf16 %v87, %v86
    %v119 = vpack.c.bf16 %v89, %v88
    %v120 = vpack.c.bf16 %v91, %v90
    %v121 = vpack.c.bf16 %v93, %v92
    %v122 = vpack.c.bf16 %v95, %v94
    %v123 = vpack.c.bf16 %v97, %v96
    %v124 = vpack.c.bf16 %v99, %v98
    %v125 = vpack.c.bf16 %v101, %v100
    %v126 = vpack.c.bf16 %v103, %v102
    %v127 = vpack.c.bf16 %v105, %v104
    %v128 = vpack.c.bf16 %v107, %v106
    %v129 = vpack.c.bf16 %v109, %v108
    %v130 = vpack.c.bf16 %v111, %v110
    %v131 = vpack.c.bf16 %v113, %v112
    %v132 = vpack.c.bf16 %v115, %v114
    %v133 = vpack.c.bf16 %v117, %v116
    %v136 = vunpack.c.l.b16 %v44
    %v137 = vunpack.c.h.b16 %v44
    %v138 = vunpack.c.l.b16 %v45
    %v139 = vunpack.c.h.b16 %v45
    %v140 = vpack.c.b16 %v138, %v136
    %v141 = vpack.c.b16 %v139, %v137
    %144 = vmatpush.bf16.msra.mxu0 %v125
    %145 = vmatpush.bf16.msra.mxu0 %v124
    %146 = vmatpush.bf16.msra.mxu0 %v123
    %147 = vmatpush.bf16.msra.mxu0 %v122
    %148 = vmatpush.bf16.msra.mxu0 %v121
    %149 = vmatpush.bf16.msra.mxu0 %v120
    %150 = vmatpush.bf16.msra.mxu0 %v119
    %151 = vmatpush.bf16.msra.mxu0 %v118
    %152 = vmatmul.bf16.gmra.mxu0 %v140
    %v153 = vpop.f32.mrf.mxu0
    %v154 = vadd.f32 0.0, %v153
    %v155 = vpop.f32.mrf.mxu0
    %v156 = vadd.f32 0.0, %v155
    %157 = vdwg.mxu0
    %158 = vmatpush.bf16.msra.mxu0 %v133
    %159 = vmatpush.bf16.msra.mxu0 %v132
    %160 = vmatpush.bf16.msra.mxu0 %v131
    %161 = vmatpush.bf16.msra.mxu0 %v130
    %162 = vmatpush.bf16.msra.mxu0 %v129
    %163 = vmatpush.bf16.msra.mxu0 %v128
    %164 = vmatpush.bf16.msra.mxu0 %v127
    %165 = vmatpush.bf16.msra.mxu0 %v126
    %166 = vmatmul.bf16.gmra.mxu0 %v141
    %v167 = vpop.f32.mrf.mxu0
    %v168 = vadd.f32 %v154, %v167
    %v169 = vpop.f32.mrf.mxu0
    %v170 = vadd.f32 %v156, %v169
    %171 = vdwg.mxu0
    %v172 = vld [vmem:[#allocation5] sm:$0xff]
    %v173 = vld [vmem:[#allocation5 + $0x8] sm:$0xff]
    %v174 = vld [vmem:[%s2] sm:$0x1]
    %v176 = vperm.slane %v174, 0
    %v178 = vmul.f32 %v168, %v176
    %v179 = vmul.f32 %v170, %v176
    %v180 = vadd.f32 %v172, %v178
    %v181 = vadd.f32 %v173, %v179
    %182 = vst [vmem:[#allocation5] sm:$0xff] %v180
    %183 = vst [vmem:[#allocation5 + $0x8] sm:$0xff] %v181
    %v184 = vld [vmem:[%s0 + $0x8] sm:$0xff]
    %v185 = vld [vmem:[%s0 + $0x18] sm:$0xff]
    %s186 = scalar_lea.vmem [#allocation2], 64
    %v187 = vld [vmem:[%s186] sm:$0xff]
    %v188 = vld [vmem:[%s186 + $0x8] sm:$0xff]
    %v189 = vld [vmem:[%s186 + $0x10] sm:$0xff]
    %v190 = vld [vmem:[%s186 + $0x18] sm:$0xff]
    %v191 = vld [vmem:[%s186 + $0x20] sm:$0xff]
    %v192 = vld [vmem:[%s186 + $0x28] sm:$0xff]
    %v193 = vld [vmem:[%s186 + $0x30] sm:$0xff]
    %v194 = vld [vmem:[%s186 + $0x38] sm:$0xff]
    %v195 = vunpack.c.0.s8 %v187
    %v196 = vunpack.c.1.s8 %v187
    %v197 = vunpack.c.2.s8 %v187
    %v198 = vunpack.c.3.s8 %v187
    %v199 = vunpack.c.0.s8 %v188
    %v200 = vunpack.c.1.s8 %v188
    %v201 = vunpack.c.2.s8 %v188
    %v202 = vunpack.c.3.s8 %v188
    %v203 = vunpack.c.0.s8 %v189
    %v204 = vunpack.c.1.s8 %v189
    %v205 = vunpack.c.2.s8 %v189
    %v206 = vunpack.c.3.s8 %v189
    %v207 = vunpack.c.0.s8 %v190
    %v208 = vunpack.c.1.s8 %v190
    %v209 = vunpack.c.2.s8 %v190
    %v210 = vunpack.c.3.s8 %v190
    %v211 = vunpack.c.0.s8 %v191
    %v212 = vunpack.c.1.s8 %v191
    %v213 = vunpack.c.2.s8 %v191
    %v214 = vunpack.c.3.s8 %v191
    %v215 = vunpack.c.0.s8 %v192
    %v216 = vunpack.c.1.s8 %v192
    %v217 = vunpack.c.2.s8 %v192
    %v218 = vunpack.c.3.s8 %v192
    %v219 = vunpack.c.0.s8 %v193
    %v220 = vunpack.c.1.s8 %v193
    %v221 = vunpack.c.2.s8 %v193
    %v222 = vunpack.c.3.s8 %v193
    %v223 = vunpack.c.0.s8 %v194
    %v224 = vunpack.c.1.s8 %v194
    %v225 = vunpack.c.2.s8 %v194
    %v226 = vunpack.c.3.s8 %v194
    %v227 = vcvt.s32.f32 %v195
    %v228 = vcvt.s32.f32 %v196
    %v229 = vcvt.s32.f32 %v197
    %v230 = vcvt.s32.f32 %v198
    %v231 = vcvt.s32.f32 %v199
    %v232 = vcvt.s32.f32 %v200
    %v233 = vcvt.s32.f32 %v201
    %v234 = vcvt.s32.f32 %v202
    %v235 = vcvt.s32.f32 %v203
    %v236 = vcvt.s32.f32 %v204
    %v237 = vcvt.s32.f32 %v205
    %v238 = vcvt.s32.f32 %v206
    %v239 = vcvt.s32.f32 %v207
    %v240 = vcvt.s32.f32 %v208
    %v241 = vcvt.s32.f32 %v209
    %v242 = vcvt.s32.f32 %v210
    %v243 = vcvt.s32.f32 %v211
    %v244 = vcvt.s32.f32 %v212
    %v245 = vcvt.s32.f32 %v213
    %v246 = vcvt.s32.f32 %v214
    %v247 = vcvt.s32.f32 %v215
    %v248 = vcvt.s32.f32 %v216
    %v249 = vcvt.s32.f32 %v217
    %v250 = vcvt.s32.f32 %v218
    %v251 = vcvt.s32.f32 %v219
    %v252 = vcvt.s32.f32 %v220
    %v253 = vcvt.s32.f32 %v221
    %v254 = vcvt.s32.f32 %v222
    %v255 = vcvt.s32.f32 %v223
    %v256 = vcvt.s32.f32 %v224
    %v257 = vcvt.s32.f32 %v225
    %v258 = vcvt.s32.f32 %v226
    %v259 = vpack.c.bf16 %v228, %v227
    %v260 = vpack.c.bf16 %v230, %v229
    %v261 = vpack.c.bf16 %v232, %v231
    %v262 = vpack.c.bf16 %v234, %v233
    %v263 = vpack.c.bf16 %v236, %v235
    %v264 = vpack.c.bf16 %v238, %v237
    %v265 = vpack.c.bf16 %v240, %v239
    %v266 = vpack.c.bf16 %v242, %v241
    %v267 = vpack.c.bf16 %v244, %v243
    %v268 = vpack.c.bf16 %v246, %v245
    %v269 = vpack.c.bf16 %v248, %v247
    %v270 = vpack.c.bf16 %v250, %v249
    %v271 = vpack.c.bf16 %v252, %v251
    %v272 = vpack.c.bf16 %v254, %v253
    %v273 = vpack.c.bf16 %v256, %v255
    %v274 = vpack.c.bf16 %v258, %v257
    %v277 = vunpack.c.l.b16 %v184
    %v278 = vunpack.c.h.b16 %v184
    %v279 = vunpack.c.l.b16 %v185
    %v280 = vunpack.c.h.b16 %v185
    %v281 = vpack.c.b16 %v279, %v277
    %v282 = vpack.c.b16 %v280, %v278
    %285 = vmatpush.bf16.msra.mxu0 %v266
    %286 = vmatpush.bf16.msra.mxu0 %v265
    %287 = vmatpush.bf16.msra.mxu0 %v264
    %288 = vmatpush.bf16.msra.mxu0 %v263
    %289 = vmatpush.bf16.msra.mxu0 %v262
    %290 = vmatpush.bf16.msra.mxu0 %v261
    %291 = vmatpush.bf16.msra.mxu0 %v260
    %292 = vmatpush.bf16.msra.mxu0 %v259
    %293 = vmatmul.bf16.gmra.mxu0 %v281
    %v294 = vpop.f32.mrf.mxu0
    %v295 = vadd.f32 0.0, %v294
    %v296 = vpop.f32.mrf.mxu0
    %v297 = vadd.f32 0.0, %v296
    %298 = vdwg.mxu0
    %299 = vmatpush.bf16.msra.mxu0 %v274
    %300 = vmatpush.bf16.msra.mxu0 %v273
    %301 = vmatpush.bf16.msra.mxu0 %v272
    %302 = vmatpush.bf16.msra.mxu0 %v271
    %303 = vmatpush.bf16.msra.mxu0 %v270
    %304 = vmatpush.bf16.msra.mxu0 %v269
    %305 = vmatpush.bf16.msra.mxu0 %v268
    %306 = vmatpush.bf16.msra.mxu0 %v267
    %307 = vmatmul.bf16.gmra.mxu0 %v282
    %v308 = vpop.f32.mrf.mxu0
    %v309 = vadd.f32 %v295, %v308
    %v310 = vpop.f32.mrf.mxu0
    %v311 = vadd.f32 %v297, %v310
    %312 = vdwg.mxu0
    %v313 = vld [vmem:[#allocation5] sm:$0xff]
    %v314 = vld [vmem:[#allocation5 + $0x8] sm:$0xff]
    %s315 = scalar_lea.vmem %s2, 1
    %v316 = vld [vmem:[%s315] sm:$0x1]
    %v318 = vperm.slane %v316, 0
    %v320 = vmul.f32 %v309, %v318
    %v321 = vmul.f32 %v311, %v318
    %v322 = vadd.f32 %v313, %v320
    %v323 = vadd.f32 %v314, %v321
    %324 = vst [vmem:[#allocation5] sm:$0xff] %v322
    %325 = vst [vmem:[#allocation5 + $0x8] sm:$0xff] %v323
    // Predicated region
    $region26: #{clinear_forward.1} parent=1 // pred_check
      _
    $region27: #{clinear_forward.1} parent=1 // pred_check_branch
      %327 = sbr.rel (0) target = $region29
    $region28: #{clinear_forward.1} parent=1 // pred_region
      %329 = vsyncadd [#allocation4], 0
      %s330 = sshll.u32 [#allocation5], 4
      %s331 = int_to_ptr.vmem [resolvable:$true] %s330
      %s332 = sshll.u32 %s4, 4
      %s333 = int_to_ptr.hbm [resolvable:$true] %s332
      %338 = dma.vmem_to_hbm [thread:$0]  %s331, 256, %s333, [#allocation4], 128, 128, 8
    $region29: #{clinear_forward.1} parent=1 // pred_fallthru
      _
    // Predicated region
    $region30: #{clinear_forward.1} parent=1 // pred_check
      _
    $region31: #{clinear_forward.1} parent=1 // pred_check_branch
      %340 = sbr.rel (0) target = $region33
    $region32: #{clinear_forward.1} parent=1 // pred_region
      %342 = dma.done [#allocation4], 256
    $region33: #{clinear_forward.1} parent=1 // pred_fallthru
      _
    %343 = vsyncpa [#allocation3], 1
    %344 = vsyncpa [#allocation4], 1

</llo_original>
